<compile_context>
chip_gen: v7x
topology: tpu7x:2x2x1
jax: 0.10.0
libtpu: 0.0.40
codegen_flags: <defaults>
</compile_context>

<pallas_src>
import jax
import jax.numpy as jnp
from jax import lax
from jax.experimental import pallas as pl
from jax.experimental.pallas import tpu as pltpu

PACK = 8  # sublane fold: 8 consecutive rows of x packed into one lane-dense row


def _round_up(n, m):
    return ((n + m - 1) // m) * m


def _adapter_kernel(x_ref, w_ref, b_ref, o_ref):
    # x_ref: (TM, PACK*D) f32   (lane-dense packed rows of x)
    # w_ref: (PACK*D, PACK*A) f32 (block-diagonal, holds W^T blocks)
    # b_ref: (1, PACK*A) f32
    # o_ref: (TM, PACK*A) out dtype
    y = jnp.dot(
        x_ref[...],
        w_ref[...],
        preferred_element_type=jnp.float32,
        precision=lax.Precision.HIGHEST,
    )
    o_ref[...] = (y + b_ref[...]).astype(o_ref.dtype)


def adapter_layer(x, weight, bias, *, tile_m_packed=4096):
    """x: (B, S, D); weight: (A, D) (PyTorch nn.Linear layout); bias: (A,).

    Returns (B, S, A) = x @ weight.T + bias.
    """
    B, S, D = x.shape
    A = weight.shape[0]
    M = B * S

    # ---- lane-dense packing (wrapper-side, contiguous reshapes only) ----
    Mp = _round_up(M, PACK)
    x2d = x.reshape(M, D)
    if Mp != M:
        x2d = jnp.pad(x2d, ((0, Mp - M), (0, 0)))
    Mp8 = Mp // PACK
    x_packed = x2d.reshape(Mp8, PACK * D)  # no data movement: contiguous reshape

    # Block-diagonal weight: PACK copies of W^T (D, A) on the diagonal -> the
    # kernel contracts with a standard ((1,),(0,)) dot (no per-step transpose).
    wt = weight.astype(jnp.float32).T                           # (D, A)
    w_block = jnp.kron(jnp.eye(PACK, dtype=jnp.float32), wt)    # (PACK*D, PACK*A)
    b_tiled = jnp.tile(bias.astype(jnp.float32), PACK).reshape(1, PACK * A)

    # ---- row tiling ----
    # Large tiles amortise per-grid-step overhead; footprint at tm=4096 is
    # ~2*(4096*256*4 + 4096*128*4) B ~= 12.25 MiB double-buffered.
    if Mp8 <= tile_m_packed:
        tm = Mp8                                   # single exact block
    else:
        tm = _round_up(tile_m_packed, PACK)        # sublane-aligned tile
    grid = (pl.cdiv(Mp8, tm),)

    out_packed = pl.pallas_call(
        _adapter_kernel,
        out_shape=jax.ShapeDtypeStruct((Mp8, PACK * A), x.dtype),
        grid=grid,
        in_specs=[
            pl.BlockSpec((tm, PACK * D), lambda i: (i, 0)),        # streamed x
            pl.BlockSpec((PACK * D, PACK * A), lambda i: (0, 0)),  # resident W
            pl.BlockSpec((1, PACK * A), lambda i: (0, 0)),         # resident bias
        ],
        out_specs=pl.BlockSpec((tm, PACK * A), lambda i: (i, 0)),
        compiler_params=pltpu.CompilerParams(
            dimension_semantics=("parallel",),      # megacore sharding on v7x
            vmem_limit_bytes=32 * 1024 * 1024,      # > v5e's 16 MiB scoped default
        ),
    )(x_packed, w_block, b_tiled)

    out = out_packed.reshape(Mp, A)
    if Mp != M:
        out = out[:M]
    return out.reshape(B, S, A)


if __name__ == "__main__":
    # Small shapes consistent with the module: dim=32, adapter_dim=16.
    B, S, D, A = 2, 8, 32, 16

    key = jax.random.PRNGKey(0)
    kx, kw, kb = jax.random.split(key, 3)

    x = jax.random.normal(kx, (B, S, D), dtype=jnp.float32)
    # Deterministic parameter init (mimics PyTorch Linear's uniform bound 1/sqrt(D)).
    bound = 1.0 / jnp.sqrt(jnp.float32(D))
    weight = jax.random.uniform(kw, (A, D), jnp.float32, -bound, bound)
    bias = jax.random.uniform(kb, (A,), jnp.float32, -bound, bound)

    out = adapter_layer(x, weight, bias)
    jax.block_until_ready(out)

    # Correctness vs. plain f32 JAX reference of nn.Linear.
    ref = x @ weight.T + bias
    assert out.shape == (B, S, A)
    assert jnp.allclose(out, ref, atol=1e-2, rtol=1e-2)

    # Ragged-M path (M not a multiple of the pack factor): exercises padding.
    Br, Sr = 1, 5
    xr = jax.random.normal(jax.random.PRNGKey(1), (Br, Sr, D), dtype=jnp.float32)
    outr = adapter_layer(xr, weight, bias)
    jax.block_until_ready(outr)
    refr = xr @ weight.T + bias
    assert outr.shape == (Br, Sr, A)
    assert jnp.allclose(outr, refr, atol=1e-2, rtol=1e-2)

    print("KERNEL_OK")
</pallas_src>

<mosaic_0001>
module attributes {stable_mosaic.version = 11 : i64} {
  func.func @_adapter_kernel(%arg0: i32, %arg1: memref<2x256xf32, #tpu.memory_space<vmem>>, %arg2: memref<256x128xf32, #tpu.memory_space<vmem>>, %arg3: memref<1x128xf32, #tpu.memory_space<vmem>>, %arg4: memref<2x128xf32, #tpu.memory_space<vmem>>) attributes {dimension_semantics = [#tpu.dimension_semantics<parallel>], iteration_bounds = array<i64: 1>, scalar_prefetch = 0 : i64, scratch_operands = 0 : i64, tpu.core_type = #tpu.core_type<tc>, window_params = [{transform_indices = @transform_0, window_bounds = array<i64: 2, 256>}, {pipeline_mode = #tpu.pipeline_mode<synchronous>, transform_indices = @transform_1, window_bounds = array<i64: 256, 128>}, {pipeline_mode = #tpu.pipeline_mode<synchronous>, transform_indices = @transform_2, window_bounds = array<i64: 1, 128>}, {transform_indices = @transform_3, window_bounds = array<i64: 2, 128>}]} {
    %c0 = arith.constant 0 : index
    %c0_0 = arith.constant 0 : index
    %0 = vector.load %arg1[%c0, %c0_0] : memref<2x256xf32, #tpu.memory_space<vmem>>, vector<2x256xf32>
    %c0_1 = arith.constant 0 : index
    %c0_2 = arith.constant 0 : index
    %1 = vector.load %arg2[%c0_1, %c0_2] : memref<256x128xf32, #tpu.memory_space<vmem>>, vector<256x128xf32>
    %cst = arith.constant dense<0.000000e+00> : vector<2x128xf32>
    %2 = tpu.matmul %0, %1, %cst {dimension_numbers = #tpu.dot_dimension_numbers<[1], [0], [0], [1], [0, 0, 1, 1], [], []>, precision = #tpu.contract_precision<fp32>} : vector<2x256xf32>, vector<256x128xf32>, vector<2x128xf32> -> vector<2x128xf32>
    %c0_3 = arith.constant 0 : index
    %c0_4 = arith.constant 0 : index
    %3 = vector.load %arg3[%c0_3, %c0_4] : memref<1x128xf32, #tpu.memory_space<vmem>>, vector<1x128xf32>
    %4 = vector.broadcast %3 : vector<1x128xf32> to vector<2x128xf32>
    %5 = arith.addf %2, %4 : vector<2x128xf32>
    %c0_5 = arith.constant 0 : index
    %c0_6 = arith.constant 0 : index
    %6 = vector.load %arg4[%c0_5, %c0_6] : memref<2x128xf32, #tpu.memory_space<vmem>>, vector<2x128xf32>
    tpu.vector_store %arg4[%c0_5, %c0_6], %5 {strides = array<i32>} : memref<2x128xf32, #tpu.memory_space<vmem>>, vector<2x128xf32>,
    return
  }
  func.func @transform_0(%arg0: i32) -> (i32, i32) {
    %c0_i32 = arith.constant 0 : i32
    %c0_i32_0 = arith.constant 0 : i32
    return %arg0, %c0_i32 : i32, i32
  }
  func.func @transform_1(%arg0: i32) -> (i32, i32) {
    %c0_i32 = arith.constant 0 : i32
    %c0_i32_0 = arith.constant 0 : i32
    %c0_i32_1 = arith.constant 0 : i32
    return %c0_i32, %c0_i32_0 : i32, i32
  }
  func.func @transform_2(%arg0: i32) -> (i32, i32) {
    %c0_i32 = arith.constant 0 : i32
    %c0_i32_0 = arith.constant 0 : i32
    %c0_i32_1 = arith.constant 0 : i32
    return %c0_i32, %c0_i32_0 : i32, i32
  }
  func.func @transform_3(%arg0: i32) -> (i32, i32) {
    %c0_i32 = arith.constant 0 : i32
    %c0_i32_0 = arith.constant 0 : i32
    return %arg0, %c0_i32 : i32, i32
  }
}

</mosaic_0001>

<llo_original>
// kernel: tpu_custom_call.1
$region0: #{tpu_custom_call.1}
  #allocation0 [shape = 'u32[]', space=smem, size = 0x4, offset = 0x4, fixed_abs, tag = 'smem constant byte address 0x4 - core index']
  #allocation1 [shape = 'u32[144,128]{1,0:T(1,128)}', space=vmem, size = 0x12000, scoped, tag = 'internal scratch']
  %s0 = inlined_call_operand.hbm [shape: f32[2,256], index: 0, kind: input, shape index: {}]
  %s1 = inlined_call_operand.hbm [shape: f32[256,128], index: 1, kind: input, shape index: {}]
  %s2 = inlined_call_operand.vmem [shape: f32[1,128], index: 2, kind: input, shape index: {}]
  %s3 = inlined_call_operand.hbm [shape: f32[2,128], index: 3, kind: output, shape index: {}]
  %s4 = sld [smem:[#allocation0]]
  $region30: #{tpu_custom_call.1} parent=0
    _
  %s6 = ssub.s32 1, %s4
  %s7 = scalar_select 0, %s6, %s4
  $region1: #{tpu_custom_call.1} parent=0
    #allocation2 [shape = 'u8[2048]{0}', space=vmem, size = 0x800, scoped, tag = 'input window, operand 0, single buffered']
    #allocation3 [shape = 's32[1]{0}', space=sflag, size = 0x4, scoped, tag = 'scoped memory for tpu_custom_call.1']
    #allocation4 [shape = 's32[1]{0}', space=sflag, size = 0x4, scoped, tag = 'scoped memory for tpu_custom_call.1']
    #allocation5 [shape = 'u8[131072]{0}', space=vmem, size = 0x20000, scoped, tag = 'input window, operand 1, single buffered']
    #allocation6 [shape = 's32[1]{0}', space=sflag, size = 0x4, scoped, tag = 'scoped memory for tpu_custom_call.1']
    #allocation7 [shape = 'u8[1024]{0}', space=vmem, size = 0x400, scoped, tag = 'output window, operand 0, single buffered']
    %8 = vsyncpa [#allocation3], 0
    %9 = vsyncpa [#allocation6], 0
    %10 = vsyncpa [#allocation4], 0
    // Predicated region
    $region2: #{tpu_custom_call.1} parent=1 // pred_check
      _
    $region3: #{tpu_custom_call.1} parent=1 // pred_check_branch
      %12 = sbr.rel (0) target = $region5
    $region4: #{tpu_custom_call.1} parent=1 // pred_region
      %s14 = ssub.s32 64, 64
      %15 = vsyncadd [#allocation3], %s14
      %s17 = sshll.u32 [#allocation2], 4
      %s18 = int_to_ptr.vmem [resolvable:$true] %s17
      %20 = dma.hbm_to_vmem [thread:$0]  %s0, 64, %s18, [#allocation3]
    $region5: #{tpu_custom_call.1} parent=1 // pred_fallthru
      _
    // Predicated region
    $region6: #{tpu_custom_call.1} parent=1 // pred_check
      _
    $region7: #{tpu_custom_call.1} parent=1 // pred_check_branch
      %22 = sbr.rel (0) target = $region9
    $region8: #{tpu_custom_call.1} parent=1 // pred_region
      %s24 = ssub.s32 4096, 4096
      %25 = vsyncadd [#allocation6], %s24
      %s26 = sshll.u32 [#allocation5], 4
      %s27 = int_to_ptr.vmem [resolvable:$true] %s26
      %32 = dma.hbm_to_vmem [thread:$0]  %s1, 4096, %s27, [#allocation6], 128, 128, 8
    $region9: #{tpu_custom_call.1} parent=1 // pred_fallthru
      _
    // Predicated region
    $region10: #{tpu_custom_call.1} parent=1 // pred_check
      _
    $region11: #{tpu_custom_call.1} parent=1 // pred_check_branch
      %34 = sbr.rel (0) target = $region13
    $region12: #{tpu_custom_call.1} parent=1 // pred_region
      _
    $region13: #{tpu_custom_call.1} parent=1 // pred_fallthru
      _
    // Predicated region
    $region14: #{tpu_custom_call.1} parent=1 // pred_check
      _
    $region15: #{tpu_custom_call.1} parent=1 // pred_check_branch
      %36 = sbr.rel (0) target = $region17
    $region16: #{tpu_custom_call.1} parent=1 // pred_region
      %37 = dma.done [#allocation3], 64
    $region17: #{tpu_custom_call.1} parent=1 // pred_fallthru
      _
    // Predicated region
    $region18: #{tpu_custom_call.1} parent=1 // pred_check
      _
    $region19: #{tpu_custom_call.1} parent=1 // pred_check_branch
      %39 = sbr.rel (0) target = $region21
    $region20: #{tpu_custom_call.1} parent=1 // pred_region
      %40 = dma.done [#allocation6], 4096
    $region21: #{tpu_custom_call.1} parent=1 // pred_fallthru
      _
    %v41 = vld [vmem:[#allocation2] sm:$0xf]
    %v42 = vld [vmem:[#allocation5] sm:$0xff]
    %v43 = vld [vmem:[#allocation5 + $0x8] sm:$0xff]
    %v44 = vld [vmem:[#allocation5 + $0x10] sm:$0xff]
    %v45 = vld [vmem:[#allocation5 + $0x18] sm:$0xff]
    %v46 = vld [vmem:[#allocation5 + $0x20] sm:$0xff]
    %v47 = vld [vmem:[#allocation5 + $0x28] sm:$0xff]
    %v48 = vld [vmem:[#allocation5 + $0x30] sm:$0xff]
    %v49 = vld [vmem:[#allocation5 + $0x38] sm:$0xff]
    %v50 = vld [vmem:[#allocation5 + $0x40] sm:$0xff]
    %v51 = vld [vmem:[#allocation5 + $0x48] sm:$0xff]
    %v52 = vld [vmem:[#allocation5 + $0x50] sm:$0xff]
    %v53 = vld [vmem:[#allocation5 + $0x58] sm:$0xff]
    %v54 = vld [vmem:[#allocation5 + $0x60] sm:$0xff]
    %v55 = vld [vmem:[#allocation5 + $0x68] sm:$0xff]
    %v56 = vld [vmem:[#allocation5 + $0x70] sm:$0xff]
    %v57 = vld [vmem:[#allocation5 + $0x78] sm:$0xff]
    %v58 = vld [vmem:[#allocation5 + $0x80] sm:$0xff]
    %v59 = vld [vmem:[#allocation5 + $0x88] sm:$0xff]
    %v60 = vld [vmem:[#allocation5 + $0x90] sm:$0xff]
    %v61 = vld [vmem:[#allocation5 + $0x98] sm:$0xff]
    %v62 = vld [vmem:[#allocation5 + $0xa0] sm:$0xff]
    %v63 = vld [vmem:[#allocation5 + $0xa8] sm:$0xff]
    %v64 = vld [vmem:[#allocation5 + $0xb0] sm:$0xff]
    %v65 = vld [vmem:[#allocation5 + $0xb8] sm:$0xff]
    %v66 = vld [vmem:[#allocation5 + $0xc0] sm:$0xff]
    %v67 = vld [vmem:[#allocation5 + $0xc8] sm:$0xff]
    %v68 = vld [vmem:[#allocation5 + $0xd0] sm:$0xff]
    %v69 = vld [vmem:[#allocation5 + $0xd8] sm:$0xff]
    %v70 = vld [vmem:[#allocation5 + $0xe0] sm:$0xff]
    %v71 = vld [vmem:[#allocation5 + $0xe8] sm:$0xff]
    %v72 = vld [vmem:[#allocation5 + $0xf0] sm:$0xff]
    %v73 = vld [vmem:[#allocation5 + $0xf8] sm:$0xff]
    %v74 = vld [vmem:[%s2] sm:$0x1]
    %v76 = vlaneseq
    %v77 = vshrl.u32 %v76, 7
    %v78 = vsub.s32 0, %v77
    %v79 = vrot.slane %v74, %v78
    %v83 = vunpack.c.l.s4 1983009808
    %v84 = vunpack.c.0.s8 %v83
    %v85 = vlaneseq
    %v86 = vshrl.u32 %v85, 7
    %v87 = vsub.s32 %v84, %v86
    %v88 = vrot.slane %v41, %v87
    %v89 = vcombine.high %v88, %v88
    %92 = vmatprep.subr.mxu0 0.0
    %v93 = vand.u32 %v42, 4294901760
    %94 = vmatpush1.msra.mxu0 %v93
    %95 = vmatprep.subr.mxu0 0.0
    %v96 = vand.u32 %v43, 4294901760
    %97 = vmatpush1.msra.mxu0 %v96
    %98 = vmatprep.subr.mxu0 0.0
    %v99 = vand.u32 %v44, 4294901760
    %100 = vmatpush1.msra.mxu0 %v99
    %101 = vmatprep.subr.mxu0 0.0
    %v102 = vand.u32 %v45, 4294901760
    %103 = vmatpush1.msra.mxu0 %v102
    %104 = vmatprep.subr.mxu0 0.0
    %v105 = vand.u32 %v46, 4294901760
    %106 = vmatpush1.msra.mxu0 %v105
    %107 = vmatprep.subr.mxu0 0.0
    %v108 = vand.u32 %v47, 4294901760
    %109 = vmatpush1.msra.mxu0 %v108
    %110 = vmatprep.subr.mxu0 0.0
    %v111 = vand.u32 %v48, 4294901760
    %112 = vmatpush1.msra.mxu0 %v111
    %113 = vmatprep.subr.mxu0 0.0
    %v114 = vand.u32 %v49, 4294901760
    %115 = vmatpush1.msra.mxu0 %v114
    %116 = vmatprep.subr.mxu0 0.0
    %v117 = vand.u32 %v50, 4294901760
    %118 = vmatpush1.msra.mxu0 %v117
    %119 = vmatprep.subr.mxu0 0.0
    %v120 = vand.u32 %v51, 4294901760
    %121 = vmatpush1.msra.mxu0 %v120
    %122 = vmatprep.subr.mxu0 0.0
    %v123 = vand.u32 %v52, 4294901760
    %124 = vmatpush1.msra.mxu0 %v123
    %125 = vmatprep.subr.mxu0 0.0
    %v126 = vand.u32 %v53, 4294901760
    %127 = vmatpush1.msra.mxu0 %v126
    %128 = vmatprep.subr.mxu0 0.0
    %v129 = vand.u32 %v54, 4294901760
    %130 = vmatpush1.msra.mxu0 %v129
    %131 = vmatprep.subr.mxu0 0.0
    %v132 = vand.u32 %v55, 4294901760
    %133 = vmatpush1.msra.mxu0 %v132
    %134 = vmatprep.subr.mxu0 0.0
    %v135 = vand.u32 %v56, 4294901760
    %136 = vmatpush1.msra.mxu0 %v135
    %137 = vmatprep.subr.mxu0 0.0
    %v138 = vand.u32 %v57, 4294901760
    %139 = vmatpush1.msra.mxu0 %v138
    %140 = vmatprep.subr.mxu0 0.0
    %v141 = vand.u32 %v58, 4294901760
    %142 = vmatpush1.msra.mxu0 %v141
    %143 = vmatprep.subr.mxu0 0.0
    %v144 = vand.u32 %v59, 4294901760
    %145 = vmatpush1.msra.mxu0 %v144
    %146 = vmatprep.subr.mxu0 0.0
    %v147 = vand.u32 %v60, 4294901760
    %148 = vmatpush1.msra.mxu0 %v147
    %149 = vmatprep.subr.mxu0 0.0
    %v150 = vand.u32 %v61, 4294901760
    %151 = vmatpush1.msra.mxu0 %v150
    %152 = vmatprep.subr.mxu0 0.0
    %v153 = vand.u32 %v62, 4294901760
    %154 = vmatpush1.msra.mxu0 %v153
    %155 = vmatprep.subr.mxu0 0.0
    %v156 = vand.u32 %v63, 4294901760
    %157 = vmatpush1.msra.mxu0 %v156
    %158 = vmatprep.subr.mxu0 0.0
    %v159 = vand.u32 %v64, 4294901760
    %160 = vmatpush1.msra.mxu0 %v159
    %161 = vmatprep.subr.mxu0 0.0
    %v162 = vand.u32 %v65, 4294901760
    %163 = vmatpush1.msra.mxu0 %v162
    %164 = vmatprep.subr.mxu0 0.0
    %v165 = vand.u32 %v66, 4294901760
    %166 = vmatpush1.msra.mxu0 %v165
    %167 = vmatprep.subr.mxu0 0.0
    %v168 = vand.u32 %v67, 4294901760
    %169 = vmatpush1.msra.mxu0 %v168
    %170 = vmatprep.subr.mxu0 0.0
    %v171 = vand.u32 %v68, 4294901760
    %172 = vmatpush1.msra.mxu0 %v171
    %173 = vmatprep.subr.mxu0 0.0
    %v174 = vand.u32 %v69, 4294901760
    %175 = vmatpush1.msra.mxu0 %v174
    %176 = vmatprep.subr.mxu0 0.0
    %v177 = vand.u32 %v70, 4294901760
    %178 = vmatpush1.msra.mxu0 %v177
    %179 = vmatprep.subr.mxu0 0.0
    %v180 = vand.u32 %v71, 4294901760
    %181 = vmatpush1.msra.mxu0 %v180
    %182 = vmatprep.subr.mxu0 0.0
    %v183 = vand.u32 %v72, 4294901760
    %184 = vmatpush1.msra.mxu0 %v183
    %185 = vmatprep.subr.mxu0 0.0
    %v186 = vand.u32 %v73, 4294901760
    %187 = vmatpush1.msra.mxu0 %v186
    %v188 = vand.u32 %v89, 4294901760
    %v189 = vsub.f32 %v89, %v188
    %v190 = vand.u32 %v189, 4294901760
    %v191 = vsub.f32 %v189, %v190
    %v192 = vand.u32 %v191, 4294901760
    %193 = vmatprep.mubr.f32.mxu0 %v192
    %v194 = vand.u32 %v88, 4294901760
    %v195 = vsub.f32 %v88, %v194
    %v196 = vand.u32 %v195, 4294901760
    %v197 = vsub.f32 %v195, %v196
    %v198 = vand.u32 %v197, 4294901760
    %199 = vmatmul.mubr.f32.gmra.mrb[0].mxu0 %v198
    %v200 = vpop.f32.mrb[0].mxu0
    %v201 = vadd.f32 %v79, %v200
    %v202 = vpop.f32.mrb[0].mxu0
    %203 = vdwg.mxu0
    %204 = vmatprep.subr.mxu0 0.0
    %v205 = vand.u32 %v42, 4294901760
    %v206 = vsub.f32 %v42, %v205
    %v207 = vand.u32 %v206, 4294901760
    %v208 = vsub.f32 %v206, %v207
    %v209 = vand.u32 %v208, 4294901760
    %210 = vmatpush1.msra.mxu0 %v209
    %211 = vmatprep.subr.mxu0 0.0
    %v212 = vand.u32 %v43, 4294901760
    %v213 = vsub.f32 %v43, %v212
    %v214 = vand.u32 %v213, 4294901760
    %v215 = vsub.f32 %v213, %v214
    %v216 = vand.u32 %v215, 4294901760
    %217 = vmatpush1.msra.mxu0 %v216
    %218 = vmatprep.subr.mxu0 0.0
    %v219 = vand.u32 %v44, 4294901760
    %v220 = vsub.f32 %v44, %v219
    %v221 = vand.u32 %v220, 4294901760
    %v222 = vsub.f32 %v220, %v221
    %v223 = vand.u32 %v222, 4294901760
    %224 = vmatpush1.msra.mxu0 %v223
    %225 = vmatprep.subr.mxu0 0.0
    %v226 = vand.u32 %v45, 4294901760
    %v227 = vsub.f32 %v45, %v226
    %v228 = vand.u32 %v227, 4294901760
    %v229 = vsub.f32 %v227, %v228
    %v230 = vand.u32 %v229, 4294901760
    %231 = vmatpush1.msra.mxu0 %v230
    %232 = vmatprep.subr.mxu0 0.0
    %v233 = vand.u32 %v46, 4294901760
    %v234 = vsub.f32 %v46, %v233
    %v235 = vand.u32 %v234, 4294901760
    %v236 = vsub.f32 %v234, %v235
    %v237 = vand.u32 %v236, 4294901760
    %238 = vmatpush1.msra.mxu0 %v237
    %239 = vmatprep.subr.mxu0 0.0
    %v240 = vand.u32 %v47, 4294901760
    %v241 = vsub.f32 %v47, %v240
    %v242 = vand.u32 %v241, 4294901760
    %v243 = vsub.f32 %v241, %v242
    %v244 = vand.u32 %v243, 4294901760
    %245 = vmatpush1.msra.mxu0 %v244
    %246 = vmatprep.subr.mxu0 0.0
    %v247 = vand.u32 %v48, 4294901760
    %v248 = vsub.f32 %v48, %v247
    %v249 = vand.u32 %v248, 4294901760
    %v250 = vsub.f32 %v248, %v249
    %v251 = vand.u32 %v250, 4294901760
    %252 = vmatpush1.msra.mxu0 %v251
    %253 = vmatprep.subr.mxu0 0.0
    %v254 = vand.u32 %v49, 4294901760
    %v255 = vsub.f32 %v49, %v254
    %v256 = vand.u32 %v255, 4294901760
    %v257 = vsub.f32 %v255, %v256
    %v258 = vand.u32 %v257, 4294901760
    %259 = vmatpush1.msra.mxu0 %v258
    %260 = vmatprep.subr.mxu0 0.0
    %v261 = vand.u32 %v50, 4294901760
    %v262 = vsub.f32 %v50, %v261
    %v263 = vand.u32 %v262, 4294901760
    %v264 = vsub.f32 %v262, %v263
    %v265 = vand.u32 %v264, 4294901760
    %266 = vmatpush1.msra.mxu0 %v265
    %267 = vmatprep.subr.mxu0 0.0
    %v268 = vand.u32 %v51, 4294901760
    %v269 = vsub.f32 %v51, %v268
    %v270 = vand.u32 %v269, 4294901760
    %v271 = vsub.f32 %v269, %v270
    %v272 = vand.u32 %v271, 4294901760
    %273 = vmatpush1.msra.mxu0 %v272
    %274 = vmatprep.subr.mxu0 0.0
    %v275 = vand.u32 %v52, 4294901760
    %v276 = vsub.f32 %v52, %v275
    %v277 = vand.u32 %v276, 4294901760
    %v278 = vsub.f32 %v276, %v277
    %v279 = vand.u32 %v278, 4294901760
    %280 = vmatpush1.msra.mxu0 %v279
    %281 = vmatprep.subr.mxu0 0.0
    %v282 = vand.u32 %v53, 4294901760
    %v283 = vsub.f32 %v53, %v282
    %v284 = vand.u32 %v283, 4294901760
    %v285 = vsub.f32 %v283, %v284
    %v286 = vand.u32 %v285, 4294901760
    %287 = vmatpush1.msra.mxu0 %v286
    %288 = vmatprep.subr.mxu0 0.0
    %v289 = vand.u32 %v54, 4294901760
    %v290 = vsub.f32 %v54, %v289
    %v291 = vand.u32 %v290, 4294901760
    %v292 = vsub.f32 %v290, %v291
    %v293 = vand.u32 %v292, 4294901760
    %294 = vmatpush1.msra.mxu0 %v293
    %295 = vmatprep.subr.mxu0 0.0
    %v296 = vand.u32 %v55, 4294901760
    %v297 = vsub.f32 %v55, %v296
    %v298 = vand.u32 %v297, 4294901760
    %v299 = vsub.f32 %v297, %v298
    %v300 = vand.u32 %v299, 4294901760
    %301 = vmatpush1.msra.mxu0 %v300
    %302 = vmatprep.subr.mxu0 0.0
    %v303 = vand.u32 %v56, 4294901760
    %v304 = vsub.f32 %v56, %v303
    %v305 = vand.u32 %v304, 4294901760
    %v306 = vsub.f32 %v304, %v305
    %v307 = vand.u32 %v306, 4294901760
    %308 = vmatpush1.msra.mxu0 %v307
    %309 = vmatprep.subr.mxu0 0.0
    %v310 = vand.u32 %v57, 4294901760
    %v311 = vsub.f32 %v57, %v310
    %v312 = vand.u32 %v311, 4294901760
    %v313 = vsub.f32 %v311, %v312
    %v314 = vand.u32 %v313, 4294901760
    %315 = vmatpush1.msra.mxu0 %v314
    %316 = vmatprep.subr.mxu0 0.0
    %v317 = vand.u32 %v58, 4294901760
    %v318 = vsub.f32 %v58, %v317
    %v319 = vand.u32 %v318, 4294901760
    %v320 = vsub.f32 %v318, %v319
    %v321 = vand.u32 %v320, 4294901760
    %322 = vmatpush1.msra.mxu0 %v321
    %323 = vmatprep.subr.mxu0 0.0
    %v324 = vand.u32 %v59, 4294901760
    %v325 = vsub.f32 %v59, %v324
    %v326 = vand.u32 %v325, 4294901760
    %v327 = vsub.f32 %v325, %v326
    %v328 = vand.u32 %v327, 4294901760
    %329 = vmatpush1.msra.mxu0 %v328
    %330 = vmatprep.subr.mxu0 0.0
    %v331 = vand.u32 %v60, 4294901760
    %v332 = vsub.f32 %v60, %v331
    %v333 = vand.u32 %v332, 4294901760
    %v334 = vsub.f32 %v332, %v333
    %v335 = vand.u32 %v334, 4294901760
    %336 = vmatpush1.msra.mxu0 %v335
    %337 = vmatprep.subr.mxu0 0.0
    %v338 = vand.u32 %v61, 4294901760
    %v339 = vsub.f32 %v61, %v338
    %v340 = vand.u32 %v339, 4294901760
    %v341 = vsub.f32 %v339, %v340
    %v342 = vand.u32 %v341, 4294901760
    %343 = vmatpush1.msra.mxu0 %v342
    %344 = vmatprep.subr.mxu0 0.0
    %v345 = vand.u32 %v62, 4294901760
    %v346 = vsub.f32 %v62, %v345
    %v347 = vand.u32 %v346, 4294901760
    %v348 = vsub.f32 %v346, %v347
    %v349 = vand.u32 %v348, 4294901760
    %350 = vmatpush1.msra.mxu0 %v349
    %351 = vmatprep.subr.mxu0 0.0
    %v352 = vand.u32 %v63, 4294901760
    %v353 = vsub.f32 %v63, %v352
    %v354 = vand.u32 %v353, 4294901760
    %v355 = vsub.f32 %v353, %v354
    %v356 = vand.u32 %v355, 4294901760
    %357 = vmatpush1.msra.mxu0 %v356
    %358 = vmatprep.subr.mxu0 0.0
    %v359 = vand.u32 %v64, 4294901760
    %v360 = vsub.f32 %v64, %v359
    %v361 = vand.u32 %v360, 4294901760
    %v362 = vsub.f32 %v360, %v361
    %v363 = vand.u32 %v362, 4294901760
    %364 = vmatpush1.msra.mxu0 %v363
    %365 = vmatprep.subr.mxu0 0.0
    %v366 = vand.u32 %v65, 4294901760
    %v367 = vsub.f32 %v65, %v366
    %v368 = vand.u32 %v367, 4294901760
    %v369 = vsub.f32 %v367, %v368
    %v370 = vand.u32 %v369, 4294901760
    %371 = vmatpush1.msra.mxu0 %v370
    %372 = vmatprep.subr.mxu0 0.0
    %v373 = vand.u32 %v66, 4294901760
    %v374 = vsub.f32 %v66, %v373
    %v375 = vand.u32 %v374, 4294901760
    %v376 = vsub.f32 %v374, %v375
    %v377 = vand.u32 %v376, 4294901760
    %378 = vmatpush1.msra.mxu0 %v377
    %379 = vmatprep.subr.mxu0 0.0
    %v380 = vand.u32 %v67, 4294901760
    %v381 = vsub.f32 %v67, %v380
    %v382 = vand.u32 %v381, 4294901760
    %v383 = vsub.f32 %v381, %v382
    %v384 = vand.u32 %v383, 4294901760
    %385 = vmatpush1.msra.mxu0 %v384
    %386 = vmatprep.subr.mxu0 0.0
    %v387 = vand.u32 %v68, 4294901760
    %v388 = vsub.f32 %v68, %v387
    %v389 = vand.u32 %v388, 4294901760
    %v390 = vsub.f32 %v388, %v389
    %v391 = vand.u32 %v390, 4294901760
    %392 = vmatpush1.msra.mxu0 %v391
    %393 = vmatprep.subr.mxu0 0.0
    %v394 = vand.u32 %v69, 4294901760
    %v395 = vsub.f32 %v69, %v394
    %v396 = vand.u32 %v395, 4294901760
    %v397 = vsub.f32 %v395, %v396
    %v398 = vand.u32 %v397, 4294901760
    %399 = vmatpush1.msra.mxu0 %v398
    %400 = vmatprep.subr.mxu0 0.0
    %v401 = vand.u32 %v70, 4294901760
    %v402 = vsub.f32 %v70, %v401
    %v403 = vand.u32 %v402, 4294901760
    %v404 = vsub.f32 %v402, %v403
    %v405 = vand.u32 %v404, 4294901760
    %406 = vmatpush1.msra.mxu0 %v405
    %407 = vmatprep.subr.mxu0 0.0
    %v408 = vand.u32 %v71, 4294901760
    %v409 = vsub.f32 %v71, %v408
    %v410 = vand.u32 %v409, 4294901760
    %v411 = vsub.f32 %v409, %v410
    %v412 = vand.u32 %v411, 4294901760
    %413 = vmatpush1.msra.mxu0 %v412
    %414 = vmatprep.subr.mxu0 0.0
    %v415 = vand.u32 %v72, 4294901760
    %v416 = vsub.f32 %v72, %v415
    %v417 = vand.u32 %v416, 4294901760
    %v418 = vsub.f32 %v416, %v417
    %v419 = vand.u32 %v418, 4294901760
    %420 = vmatpush1.msra.mxu0 %v419
    %421 = vmatprep.subr.mxu0 0.0
    %v422 = vand.u32 %v73, 4294901760
    %v423 = vsub.f32 %v73, %v422
    %v424 = vand.u32 %v423, 4294901760
    %v425 = vsub.f32 %v423, %v424
    %v426 = vand.u32 %v425, 4294901760
    %427 = vmatpush1.msra.mxu0 %v426
    %v428 = vand.u32 %v89, 4294901760
    %429 = vmatprep.mubr.f32.mxu0 %v428
    %v430 = vand.u32 %v88, 4294901760
    %431 = vmatmul.mubr.f32.gmra.mrb[0].mxu0 %v430
    %v432 = vpop.f32.mrb[0].mxu0
    %v433 = vadd.f32 %v201, %v432
    %v434 = vpop.f32.mrb[0].mxu0
    %435 = vdwg.mxu0
    %436 = vmatprep.subr.mxu0 0.0
    %v437 = vand.u32 %v42, 4294901760
    %v438 = vsub.f32 %v42, %v437
    %439 = vmatpush1.msra.mxu0 %v438
    %440 = vmatprep.subr.mxu0 0.0
    %v441 = vand.u32 %v43, 4294901760
    %v442 = vsub.f32 %v43, %v441
    %443 = vmatpush1.msra.mxu0 %v442
    %444 = vmatprep.subr.mxu0 0.0
    %v445 = vand.u32 %v44, 4294901760
    %v446 = vsub.f32 %v44, %v445
    %447 = vmatpush1.msra.mxu0 %v446
    %448 = vmatprep.subr.mxu0 0.0
    %v449 = vand.u32 %v45, 4294901760
    %v450 = vsub.f32 %v45, %v449
    %451 = vmatpush1.msra.mxu0 %v450
    %452 = vmatprep.subr.mxu0 0.0
    %v453 = vand.u32 %v46, 4294901760
    %v454 = vsub.f32 %v46, %v453
    %455 = vmatpush1.msra.mxu0 %v454
    %456 = vmatprep.subr.mxu0 0.0
    %v457 = vand.u32 %v47, 4294901760
    %v458 = vsub.f32 %v47, %v457
    %459 = vmatpush1.msra.mxu0 %v458
    %460 = vmatprep.subr.mxu0 0.0
    %v461 = vand.u32 %v48, 4294901760
    %v462 = vsub.f32 %v48, %v461
    %463 = vmatpush1.msra.mxu0 %v462
    %464 = vmatprep.subr.mxu0 0.0
    %v465 = vand.u32 %v49, 4294901760
    %v466 = vsub.f32 %v49, %v465
    %467 = vmatpush1.msra.mxu0 %v466
    %468 = vmatprep.subr.mxu0 0.0
    %v469 = vand.u32 %v50, 4294901760
    %v470 = vsub.f32 %v50, %v469
    %471 = vmatpush1.msra.mxu0 %v470
    %472 = vmatprep.subr.mxu0 0.0
    %v473 = vand.u32 %v51, 4294901760
    %v474 = vsub.f32 %v51, %v473
    %475 = vmatpush1.msra.mxu0 %v474
    %476 = vmatprep.subr.mxu0 0.0
    %v477 = vand.u32 %v52, 4294901760
    %v478 = vsub.f32 %v52, %v477
    %479 = vmatpush1.msra.mxu0 %v478
    %480 = vmatprep.subr.mxu0 0.0
    %v481 = vand.u32 %v53, 4294901760
    %v482 = vsub.f32 %v53, %v481
    %483 = vmatpush1.msra.mxu0 %v482
    %484 = vmatprep.subr.mxu0 0.0
    %v485 = vand.u32 %v54, 4294901760
    %v486 = vsub.f32 %v54, %v485
    %487 = vmatpush1.msra.mxu0 %v486
    %488 = vmatprep.subr.mxu0 0.0
    %v489 = vand.u32 %v55, 4294901760
    %v490 = vsub.f32 %v55, %v489
    %491 = vmatpush1.msra.mxu0 %v490
    %492 = vmatprep.subr.mxu0 0.0
    %v493 = vand.u32 %v56, 4294901760
    %v494 = vsub.f32 %v56, %v493
    %495 = vmatpush1.msra.mxu0 %v494
    %496 = vmatprep.subr.mxu0 0.0
    %v497 = vand.u32 %v57, 4294901760
    %v498 = vsub.f32 %v57, %v497
    %499 = vmatpush1.msra.mxu0 %v498
    %500 = vmatprep.subr.mxu0 0.0
    %v501 = vand.u32 %v58, 4294901760
    %v502 = vsub.f32 %v58, %v501
    %503 = vmatpush1.msra.mxu0 %v502
    %504 = vmatprep.subr.mxu0 0.0
    %v505 = vand.u32 %v59, 4294901760
    %v506 = vsub.f32 %v59, %v505
    %507 = vmatpush1.msra.mxu0 %v506
    %508 = vmatprep.subr.mxu0 0.0
    %v509 = vand.u32 %v60, 4294901760
    %v510 = vsub.f32 %v60, %v509
    %511 = vmatpush1.msra.mxu0 %v510
    %512 = vmatprep.subr.mxu0 0.0
    %v513 = vand.u32 %v61, 4294901760
    %v514 = vsub.f32 %v61, %v513
    %515 = vmatpush1.msra.mxu0 %v514
    %516 = vmatprep.subr.mxu0 0.0
    %v517 = vand.u32 %v62, 4294901760
    %v518 = vsub.f32 %v62, %v517
    %519 = vmatpush1.msra.mxu0 %v518
    %520 = vmatprep.subr.mxu0 0.0
    %v521 = vand.u32 %v63, 4294901760
    %v522 = vsub.f32 %v63, %v521
    %523 = vmatpush1.msra.mxu0 %v522
    %524 = vmatprep.subr.mxu0 0.0
    %v525 = vand.u32 %v64, 4294901760
    %v526 = vsub.f32 %v64, %v525
    %527 = vmatpush1.msra.mxu0 %v526
    %528 = vmatprep.subr.mxu0 0.0
    %v529 = vand.u32 %v65, 4294901760
    %v530 = vsub.f32 %v65, %v529
    %531 = vmatpush1.msra.mxu0 %v530
    %532 = vmatprep.subr.mxu0 0.0
    %v533 = vand.u32 %v66, 4294901760
    %v534 = vsub.f32 %v66, %v533
    %535 = vmatpush1.msra.mxu0 %v534
    %536 = vmatprep.subr.mxu0 0.0
    %v537 = vand.u32 %v67, 4294901760
    %v538 = vsub.f32 %v67, %v537
    %539 = vmatpush1.msra.mxu0 %v538
    %540 = vmatprep.subr.mxu0 0.0
    %v541 = vand.u32 %v68, 4294901760
    %v542 = vsub.f32 %v68, %v541
    %543 = vmatpush1.msra.mxu0 %v542
    %544 = vmatprep.subr.mxu0 0.0
    %v545 = vand.u32 %v69, 4294901760
    %v546 = vsub.f32 %v69, %v545
    %547 = vmatpush1.msra.mxu0 %v546
    %548 = vmatprep.subr.mxu0 0.0
    %v549 = vand.u32 %v70, 4294901760
    %v550 = vsub.f32 %v70, %v549
    %551 = vmatpush1.msra.mxu0 %v550
    %552 = vmatprep.subr.mxu0 0.0
    %v553 = vand.u32 %v71, 4294901760
    %v554 = vsub.f32 %v71, %v553
    %555 = vmatpush1.msra.mxu0 %v554
    %556 = vmatprep.subr.mxu0 0.0
    %v557 = vand.u32 %v72, 4294901760
    %v558 = vsub.f32 %v72, %v557
    %559 = vmatpush1.msra.mxu0 %v558
    %560 = vmatprep.subr.mxu0 0.0
    %v561 = vand.u32 %v73, 4294901760
    %v562 = vsub.f32 %v73, %v561
    %563 = vmatpush1.msra.mxu0 %v562
    %v564 = vand.u32 %v89, 4294901760
    %v565 = vsub.f32 %v89, %v564
    %566 = vmatprep.mubr.f32.mxu0 %v565
    %v567 = vand.u32 %v88, 4294901760
    %v568 = vsub.f32 %v88, %v567
    %569 = vmatmul.mubr.f32.gmra.mrb[0].mxu0 %v568
    %v570 = vpop.f32.mrb[0].mxu0
    %v571 = vadd.f32 %v433, %v570
    %v572 = vpop.f32.mrb[0].mxu0
    %573 = vdwg.mxu0
    %574 = vmatprep.subr.mxu0 0.0
    %v575 = vand.u32 %v42, 4294901760
    %576 = vmatpush1.msra.mxu0 %v575
    %577 = vmatprep.subr.mxu0 0.0
    %v578 = vand.u32 %v43, 4294901760
    %579 = vmatpush1.msra.mxu0 %v578
    %580 = vmatprep.subr.mxu0 0.0
    %v581 = vand.u32 %v44, 4294901760
    %582 = vmatpush1.msra.mxu0 %v581
    %583 = vmatprep.subr.mxu0 0.0
    %v584 = vand.u32 %v45, 4294901760
    %585 = vmatpush1.msra.mxu0 %v584
    %586 = vmatprep.subr.mxu0 0.0
    %v587 = vand.u32 %v46, 4294901760
    %588 = vmatpush1.msra.mxu0 %v587
    %589 = vmatprep.subr.mxu0 0.0
    %v590 = vand.u32 %v47, 4294901760
    %591 = vmatpush1.msra.mxu0 %v590
    %592 = vmatprep.subr.mxu0 0.0
    %v593 = vand.u32 %v48, 4294901760
    %594 = vmatpush1.msra.mxu0 %v593
    %595 = vmatprep.subr.mxu0 0.0
    %v596 = vand.u32 %v49, 4294901760
    %597 = vmatpush1.msra.mxu0 %v596
    %598 = vmatprep.subr.mxu0 0.0
    %v599 = vand.u32 %v50, 4294901760
    %600 = vmatpush1.msra.mxu0 %v599
    %601 = vmatprep.subr.mxu0 0.0
    %v602 = vand.u32 %v51, 4294901760
    %603 = vmatpush1.msra.mxu0 %v602
    %604 = vmatprep.subr.mxu0 0.0
    %v605 = vand.u32 %v52, 4294901760
    %606 = vmatpush1.msra.mxu0 %v605
    %607 = vmatprep.subr.mxu0 0.0
    %v608 = vand.u32 %v53, 4294901760
    %609 = vmatpush1.msra.mxu0 %v608
    %610 = vmatprep.subr.mxu0 0.0
    %v611 = vand.u32 %v54, 4294901760
    %612 = vmatpush1.msra.mxu0 %v611
    %613 = vmatprep.subr.mxu0 0.0
    %v614 = vand.u32 %v55, 4294901760
    %615 = vmatpush1.msra.mxu0 %v614
    %616 = vmatprep.subr.mxu0 0.0
    %v617 = vand.u32 %v56, 4294901760
    %618 = vmatpush1.msra.mxu0 %v617
    %619 = vmatprep.subr.mxu0 0.0
    %v620 = vand.u32 %v57, 4294901760
    %621 = vmatpush1.msra.mxu0 %v620
    %622 = vmatprep.subr.mxu0 0.0
    %v623 = vand.u32 %v58, 4294901760
    %624 = vmatpush1.msra.mxu0 %v623
    %625 = vmatprep.subr.mxu0 0.0
    %v626 = vand.u32 %v59, 4294901760
    %627 = vmatpush1.msra.mxu0 %v626
    %628 = vmatprep.subr.mxu0 0.0
    %v629 = vand.u32 %v60, 4294901760
    %630 = vmatpush1.msra.mxu0 %v629
    %631 = vmatprep.subr.mxu0 0.0
    %v632 = vand.u32 %v61, 4294901760
    %633 = vmatpush1.msra.mxu0 %v632
    %634 = vmatprep.subr.mxu0 0.0
    %v635 = vand.u32 %v62, 4294901760
    %636 = vmatpush1.msra.mxu0 %v635
    %637 = vmatprep.subr.mxu0 0.0
    %v638 = vand.u32 %v63, 4294901760
    %639 = vmatpush1.msra.mxu0 %v638
    %640 = vmatprep.subr.mxu0 0.0
    %v641 = vand.u32 %v64, 4294901760
    %642 = vmatpush1.msra.mxu0 %v641
    %643 = vmatprep.subr.mxu0 0.0
    %v644 = vand.u32 %v65, 4294901760
    %645 = vmatpush1.msra.mxu0 %v644
    %646 = vmatprep.subr.mxu0 0.0
    %v647 = vand.u32 %v66, 4294901760
    %648 = vmatpush1.msra.mxu0 %v647
    %649 = vmatprep.subr.mxu0 0.0
    %v650 = vand.u32 %v67, 4294901760
    %651 = vmatpush1.msra.mxu0 %v650
    %652 = vmatprep.subr.mxu0 0.0
    %v653 = vand.u32 %v68, 4294901760
    %654 = vmatpush1.msra.mxu0 %v653
    %655 = vmatprep.subr.mxu0 0.0
    %v656 = vand.u32 %v69, 4294901760
    %657 = vmatpush1.msra.mxu0 %v656
    %658 = vmatprep.subr.mxu0 0.0
    %v659 = vand.u32 %v70, 4294901760
    %660 = vmatpush1.msra.mxu0 %v659
    %661 = vmatprep.subr.mxu0 0.0
    %v662 = vand.u32 %v71, 4294901760
    %663 = vmatpush1.msra.mxu0 %v662
    %664 = vmatprep.subr.mxu0 0.0
    %v665 = vand.u32 %v72, 4294901760
    %666 = vmatpush1.msra.mxu0 %v665
    %667 = vmatprep.subr.mxu0 0.0
    %v668 = vand.u32 %v73, 4294901760
    %669 = vmatpush1.msra.mxu0 %v668
    %v670 = vand.u32 %v89, 4294901760
    %v671 = vsub.f32 %v89, %v670
    %v672 = vand.u32 %v671, 4294901760
    %673 = vmatprep.mubr.f32.mxu0 %v672
    %v674 = vand.u32 %v88, 4294901760
    %v675 = vsub.f32 %v88, %v674
    %v676 = vand.u32 %v675, 4294901760
    %677 = vmatmul.mubr.f32.gmra.mrb[0].mxu0 %v676
    %v678 = vpop.f32.mrb[0].mxu0
    %v679 = vadd.f32 %v571, %v678
    %v680 = vpop.f32.mrb[0].mxu0
    %681 = vdwg.mxu0
    %682 = vmatprep.subr.mxu0 0.0
    %v683 = vand.u32 %v42, 4294901760
    %v684 = vsub.f32 %v42, %v683
    %v685 = vand.u32 %v684, 4294901760
    %686 = vmatpush1.msra.mxu0 %v685
    %687 = vmatprep.subr.mxu0 0.0
    %v688 = vand.u32 %v43, 4294901760
    %v689 = vsub.f32 %v43, %v688
    %v690 = vand.u32 %v689, 4294901760
    %691 = vmatpush1.msra.mxu0 %v690
    %692 = vmatprep.subr.mxu0 0.0
    %v693 = vand.u32 %v44, 4294901760
    %v694 = vsub.f32 %v44, %v693
    %v695 = vand.u32 %v694, 4294901760
    %696 = vmatpush1.msra.mxu0 %v695
    %697 = vmatprep.subr.mxu0 0.0
    %v698 = vand.u32 %v45, 4294901760
    %v699 = vsub.f32 %v45, %v698
    %v700 = vand.u32 %v699, 4294901760
    %701 = vmatpush1.msra.mxu0 %v700
    %702 = vmatprep.subr.mxu0 0.0
    %v703 = vand.u32 %v46, 4294901760
    %v704 = vsub.f32 %v46, %v703
    %v705 = vand.u32 %v704, 4294901760
    %706 = vmatpush1.msra.mxu0 %v705
    %707 = vmatprep.subr.mxu0 0.0
    %v708 = vand.u32 %v47, 4294901760
    %v709 = vsub.f32 %v47, %v708
    %v710 = vand.u32 %v709, 4294901760
    %711 = vmatpush1.msra.mxu0 %v710
    %712 = vmatprep.subr.mxu0 0.0
    %v713 = vand.u32 %v48, 4294901760
    %v714 = vsub.f32 %v48, %v713
    %v715 = vand.u32 %v714, 4294901760
    %716 = vmatpush1.msra.mxu0 %v715
    %717 = vmatprep.subr.mxu0 0.0
    %v718 = vand.u32 %v49, 4294901760
    %v719 = vsub.f32 %v49, %v718
    %v720 = vand.u32 %v719, 4294901760
    %721 = vmatpush1.msra.mxu0 %v720
    %722 = vmatprep.subr.mxu0 0.0
    %v723 = vand.u32 %v50, 4294901760
    %v724 = vsub.f32 %v50, %v723
    %v725 = vand.u32 %v724, 4294901760
    %726 = vmatpush1.msra.mxu0 %v725
    %727 = vmatprep.subr.mxu0 0.0
    %v728 = vand.u32 %v51, 4294901760
    %v729 = vsub.f32 %v51, %v728
    %v730 = vand.u32 %v729, 4294901760
    %731 = vmatpush1.msra.mxu0 %v730
    %732 = vmatprep.subr.mxu0 0.0
    %v733 = vand.u32 %v52, 4294901760
    %v734 = vsub.f32 %v52, %v733
    %v735 = vand.u32 %v734, 4294901760
    %736 = vmatpush1.msra.mxu0 %v735
    %737 = vmatprep.subr.mxu0 0.0
    %v738 = vand.u32 %v53, 4294901760
    %v739 = vsub.f32 %v53, %v738
    %v740 = vand.u32 %v739, 4294901760
    %741 = vmatpush1.msra.mxu0 %v740
    %742 = vmatprep.subr.mxu0 0.0
    %v743 = vand.u32 %v54, 4294901760
    %v744 = vsub.f32 %v54, %v743
    %v745 = vand.u32 %v744, 4294901760
    %746 = vmatpush1.msra.mxu0 %v745
    %747 = vmatprep.subr.mxu0 0.0
    %v748 = vand.u32 %v55, 4294901760
    %v749 = vsub.f32 %v55, %v748
    %v750 = vand.u32 %v749, 4294901760
    %751 = vmatpush1.msra.mxu0 %v750
    %752 = vmatprep.subr.mxu0 0.0
    %v753 = vand.u32 %v56, 4294901760
    %v754 = vsub.f32 %v56, %v753
    %v755 = vand.u32 %v754, 4294901760
    %756 = vmatpush1.msra.mxu0 %v755
    %757 = vmatprep.subr.mxu0 0.0
    %v758 = vand.u32 %v57, 4294901760
    %v759 = vsub.f32 %v57, %v758
    %v760 = vand.u32 %v759, 4294901760
    %761 = vmatpush1.msra.mxu0 %v760
    %762 = vmatprep.subr.mxu0 0.0
    %v763 = vand.u32 %v58, 4294901760
    %v764 = vsub.f32 %v58, %v763
    %v765 = vand.u32 %v764, 4294901760
    %766 = vmatpush1.msra.mxu0 %v765
    %767 = vmatprep.subr.mxu0 0.0
    %v768 = vand.u32 %v59, 4294901760
    %v769 = vsub.f32 %v59, %v768
    %v770 = vand.u32 %v769, 4294901760
    %771 = vmatpush1.msra.mxu0 %v770
    %772 = vmatprep.subr.mxu0 0.0
    %v773 = vand.u32 %v60, 4294901760
    %v774 = vsub.f32 %v60, %v773
    %v775 = vand.u32 %v774, 4294901760
    %776 = vmatpush1.msra.mxu0 %v775
    %777 = vmatprep.subr.mxu0 0.0
    %v778 = vand.u32 %v61, 4294901760
    %v779 = vsub.f32 %v61, %v778
    %v780 = vand.u32 %v779, 4294901760
    %781 = vmatpush1.msra.mxu0 %v780
    %782 = vmatprep.subr.mxu0 0.0
    %v783 = vand.u32 %v62, 4294901760
    %v784 = vsub.f32 %v62, %v783
    %v785 = vand.u32 %v784, 4294901760
    %786 = vmatpush1.msra.mxu0 %v785
    %787 = vmatprep.subr.mxu0 0.0
    %v788 = vand.u32 %v63, 4294901760
    %v789 = vsub.f32 %v63, %v788
    %v790 = vand.u32 %v789, 4294901760
    %791 = vmatpush1.msra.mxu0 %v790
    %792 = vmatprep.subr.mxu0 0.0
    %v793 = vand.u32 %v64, 4294901760
    %v794 = vsub.f32 %v64, %v793
    %v795 = vand.u32 %v794, 4294901760
    %796 = vmatpush1.msra.mxu0 %v795
    %797 = vmatprep.subr.mxu0 0.0
    %v798 = vand.u32 %v65, 4294901760
    %v799 = vsub.f32 %v65, %v798
    %v800 = vand.u32 %v799, 4294901760
    %801 = vmatpush1.msra.mxu0 %v800
    %802 = vmatprep.subr.mxu0 0.0
    %v803 = vand.u32 %v66, 4294901760
    %v804 = vsub.f32 %v66, %v803
    %v805 = vand.u32 %v804, 4294901760
    %806 = vmatpush1.msra.mxu0 %v805
    %807 = vmatprep.subr.mxu0 0.0
    %v808 = vand.u32 %v67, 4294901760
    %v809 = vsub.f32 %v67, %v808
    %v810 = vand.u32 %v809, 4294901760
    %811 = vmatpush1.msra.mxu0 %v810
    %812 = vmatprep.subr.mxu0 0.0
    %v813 = vand.u32 %v68, 4294901760
    %v814 = vsub.f32 %v68, %v813
    %v815 = vand.u32 %v814, 4294901760
    %816 = vmatpush1.msra.mxu0 %v815
    %817 = vmatprep.subr.mxu0 0.0
    %v818 = vand.u32 %v69, 4294901760
    %v819 = vsub.f32 %v69, %v818
    %v820 = vand.u32 %v819, 4294901760
    %821 = vmatpush1.msra.mxu0 %v820
    %822 = vmatprep.subr.mxu0 0.0
    %v823 = vand.u32 %v70, 4294901760
    %v824 = vsub.f32 %v70, %v823
    %v825 = vand.u32 %v824, 4294901760
    %826 = vmatpush1.msra.mxu0 %v825
    %827 = vmatprep.subr.mxu0 0.0
    %v828 = vand.u32 %v71, 4294901760
    %v829 = vsub.f32 %v71, %v828
    %v830 = vand.u32 %v829, 4294901760
    %831 = vmatpush1.msra.mxu0 %v830
    %832 = vmatprep.subr.mxu0 0.0
    %v833 = vand.u32 %v72, 4294901760
    %v834 = vsub.f32 %v72, %v833
    %v835 = vand.u32 %v834, 4294901760
    %836 = vmatpush1.msra.mxu0 %v835
    %837 = vmatprep.subr.mxu0 0.0
    %v838 = vand.u32 %v73, 4294901760
    %v839 = vsub.f32 %v73, %v838
    %v840 = vand.u32 %v839, 4294901760
    %841 = vmatpush1.msra.mxu0 %v840
    %v842 = vand.u32 %v89, 4294901760
    %843 = vmatprep.mubr.f32.mxu0 %v842
    %v844 = vand.u32 %v88, 4294901760
    %845 = vmatmul.mubr.f32.gmra.mrb[0].mxu0 %v844
    %v846 = vpop.f32.mrb[0].mxu0
    %v847 = vadd.f32 %v679, %v846
    %v848 = vpop.f32.mrb[0].mxu0
    %849 = vdwg.mxu0
    %850 = vmatprep.subr.mxu0 0.0
    %v851 = vand.u32 %v42, 4294901760
    %852 = vmatpush1.msra.mxu0 %v851
    %853 = vmatprep.subr.mxu0 0.0
    %v854 = vand.u32 %v43, 4294901760
    %855 = vmatpush1.msra.mxu0 %v854
    %856 = vmatprep.subr.mxu0 0.0
    %v857 = vand.u32 %v44, 4294901760
    %858 = vmatpush1.msra.mxu0 %v857
    %859 = vmatprep.subr.mxu0 0.0
    %v860 = vand.u32 %v45, 4294901760
    %861 = vmatpush1.msra.mxu0 %v860
    %862 = vmatprep.subr.mxu0 0.0
    %v863 = vand.u32 %v46, 4294901760
    %864 = vmatpush1.msra.mxu0 %v863
    %865 = vmatprep.subr.mxu0 0.0
    %v866 = vand.u32 %v47, 4294901760
    %867 = vmatpush1.msra.mxu0 %v866
    %868 = vmatprep.subr.mxu0 0.0
    %v869 = vand.u32 %v48, 4294901760
    %870 = vmatpush1.msra.mxu0 %v869
    %871 = vmatprep.subr.mxu0 0.0
    %v872 = vand.u32 %v49, 4294901760
    %873 = vmatpush1.msra.mxu0 %v872
    %874 = vmatprep.subr.mxu0 0.0
    %v875 = vand.u32 %v50, 4294901760
    %876 = vmatpush1.msra.mxu0 %v875
    %877 = vmatprep.subr.mxu0 0.0
    %v878 = vand.u32 %v51, 4294901760
    %879 = vmatpush1.msra.mxu0 %v878
    %880 = vmatprep.subr.mxu0 0.0
    %v881 = vand.u32 %v52, 4294901760
    %882 = vmatpush1.msra.mxu0 %v881
    %883 = vmatprep.subr.mxu0 0.0
    %v884 = vand.u32 %v53, 4294901760
    %885 = vmatpush1.msra.mxu0 %v884
    %886 = vmatprep.subr.mxu0 0.0
    %v887 = vand.u32 %v54, 4294901760
    %888 = vmatpush1.msra.mxu0 %v887
    %889 = vmatprep.subr.mxu0 0.0
    %v890 = vand.u32 %v55, 4294901760
    %891 = vmatpush1.msra.mxu0 %v890
    %892 = vmatprep.subr.mxu0 0.0
    %v893 = vand.u32 %v56, 4294901760
    %894 = vmatpush1.msra.mxu0 %v893
    %895 = vmatprep.subr.mxu0 0.0
    %v896 = vand.u32 %v57, 4294901760
    %897 = vmatpush1.msra.mxu0 %v896
    %898 = vmatprep.subr.mxu0 0.0
    %v899 = vand.u32 %v58, 4294901760
    %900 = vmatpush1.msra.mxu0 %v899
    %901 = vmatprep.subr.mxu0 0.0
    %v902 = vand.u32 %v59, 4294901760
    %903 = vmatpush1.msra.mxu0 %v902
    %904 = vmatprep.subr.mxu0 0.0
    %v905 = vand.u32 %v60, 4294901760
    %906 = vmatpush1.msra.mxu0 %v905
    %907 = vmatprep.subr.mxu0 0.0
    %v908 = vand.u32 %v61, 4294901760
    %909 = vmatpush1.msra.mxu0 %v908
    %910 = vmatprep.subr.mxu0 0.0
    %v911 = vand.u32 %v62, 4294901760
    %912 = vmatpush1.msra.mxu0 %v911
    %913 = vmatprep.subr.mxu0 0.0
    %v914 = vand.u32 %v63, 4294901760
    %915 = vmatpush1.msra.mxu0 %v914
    %916 = vmatprep.subr.mxu0 0.0
    %v917 = vand.u32 %v64, 4294901760
    %918 = vmatpush1.msra.mxu0 %v917
    %919 = vmatprep.subr.mxu0 0.0
    %v920 = vand.u32 %v65, 4294901760
    %921 = vmatpush1.msra.mxu0 %v920
    %922 = vmatprep.subr.mxu0 0.0
    %v923 = vand.u32 %v66, 4294901760
    %924 = vmatpush1.msra.mxu0 %v923
    %925 = vmatprep.subr.mxu0 0.0
    %v926 = vand.u32 %v67, 4294901760
    %927 = vmatpush1.msra.mxu0 %v926
    %928 = vmatprep.subr.mxu0 0.0
    %v929 = vand.u32 %v68, 4294901760
    %930 = vmatpush1.msra.mxu0 %v929
    %931 = vmatprep.subr.mxu0 0.0
    %v932 = vand.u32 %v69, 4294901760
    %933 = vmatpush1.msra.mxu0 %v932
    %934 = vmatprep.subr.mxu0 0.0
    %v935 = vand.u32 %v70, 4294901760
    %936 = vmatpush1.msra.mxu0 %v935
    %937 = vmatprep.subr.mxu0 0.0
    %v938 = vand.u32 %v71, 4294901760
    %939 = vmatpush1.msra.mxu0 %v938
    %940 = vmatprep.subr.mxu0 0.0
    %v941 = vand.u32 %v72, 4294901760
    %942 = vmatpush1.msra.mxu0 %v941
    %943 = vmatprep.subr.mxu0 0.0
    %v944 = vand.u32 %v73, 4294901760
    %945 = vmatpush1.msra.mxu0 %v944
    %v946 = vand.u32 %v89, 4294901760
    %947 = vmatprep.mubr.f32.mxu0 %v946
    %v948 = vand.u32 %v88, 4294901760
    %949 = vmatmul.mubr.f32.gmra.mrb[0].mxu0 %v948
    %v950 = vpop.f32.mrb[0].mxu0
    %v951 = vadd.f32 %v847, %v950
    %v952 = vpop.f32.mrb[0].mxu0
    %953 = vdwg.mxu0
    %954 = vst [vmem:[#allocation7] sm:$0x3] %v951
    // Predicated region
    $region22: #{tpu_custom_call.1} parent=1 // pred_check
      _
    $region23: #{tpu_custom_call.1} parent=1 // pred_check_branch
      %956 = sbr.rel (0) target = $region25
    $region24: #{tpu_custom_call.1} parent=1 // pred_region
      %s958 = ssub.s32 32, 32
      %959 = vsyncadd [#allocation4], %s958
      %s961 = sshll.u32 [#allocation7], 4
      %s962 = int_to_ptr.vmem [resolvable:$true] %s961
      %964 = dma.vmem_to_hbm [thread:$0]  %s962, 32, %s3, [#allocation4]
    $region25: #{tpu_custom_call.1} parent=1 // pred_fallthru
      _
    // Predicated region
    $region26: #{tpu_custom_call.1} parent=1 // pred_check
      _
    $region27: #{tpu_custom_call.1} parent=1 // pred_check_branch
      %966 = sbr.rel (0) target = $region29
    $region28: #{tpu_custom_call.1} parent=1 // pred_region
      %967 = dma.done [#allocation4], 32
    $region29: #{tpu_custom_call.1} parent=1 // pred_fallthru
      _
    %968 = vsyncpa [#allocation3], 1
    %969 = vsyncpa [#allocation6], 1
    %970 = vsyncpa [#allocation4], 1

</llo_original>
